<compile_context>
chip_gen: v5e
topology: v5e:2x2
jax: 0.10.0
libtpu: 0.0.40
codegen_flags: <defaults>
</compile_context>

<pallas_src>
import jax
import jax.numpy as jnp
from jax import lax
from jax.experimental import pallas as pl
from jax.experimental.pallas import tpu as pltpu


def _round_up(x, m):
    return ((x + m - 1) // m) * m


def _vmem_capacity_bytes():
    """Best-effort per-core VMEM capacity query with safe fallbacks."""
    try:
        return int(pltpu.get_tpu_info().vmem_capacity_bytes)
    except Exception:
        pass
    try:
        kind = jax.devices()[0].device_kind.lower()
        if "v7" in kind:
            return 64 * 1024 * 1024
        if "v5" in kind or "v6" in kind:
            return 128 * 1024 * 1024
    except Exception:
        pass
    return 64 * 1024 * 1024  # conservative default


def _bf16_eup_ok():
    """bf16 transcendentals are supported on v6e/v7x; not on v5e and earlier."""
    try:
        kind = jax.devices()[0].device_kind.lower()
    except Exception:
        return False
    return not any(tag in kind for tag in ("v2", "v3", "v4", "v5"))


def _choose_query_tile(n, c, cvp, cqkv_p, vmem_cap):
    """Largest query tile (multiple of 128, dividing N) fitting the VMEM plan."""
    # Resident buffers: double-buffered f32 x block + bf16 qkv scratch.
    fixed = 2 * c * n * 4 + cqkv_p * n * 2
    headroom = 12 * 1024 * 1024
    budget = max(vmem_cap - headroom - fixed, 4 * 1024 * 1024)
    # Cap Tq at 256 on 64 MiB parts (v7x); allow 512 on 128 MiB parts.
    cap = 256 if vmem_cap <= 64 * 1024 * 1024 else 512
    for t in (512, 256, 128):
        if t > cap or n % t != 0:
            continue
        # Live per-tile temporaries: energy (Tq,N) f32 + p (Tq,N) (<=f32)
        # + out_ext (Cvp,Tq) f32 + double-buffered output block.
        per_tile = 2 * t * n * 4 + cvp * t * 4 + 2 * c * t * 4
        if per_tile <= budget:
            return t
    if n % 128 == 0:
        return 128
    return n  # N not 128-divisible: single full-row tile


def _make_kernel(c, c2p, cvp, n, tq, mxu_dtype, exp_in_bf16):
    num_q_tiles = n // tq

    def kernel(x_ref, w_ref, b_ref, gamma_ref, o_ref, qkv_ref):
        # x_ref:    (C, N)          full batch element (revisited across qi)
        # w_ref:    (Cqkv_p, C)     fused [Wq_pad; Wk_pad; Wv_pad+ones-row], bf16
        # b_ref:    (Cqkv_p, 1)     fused bias (f32); ones-row bias == 1
        # gamma_ref:(1,) in SMEM
        # o_ref:    (C, Tq)         output tile
        # qkv_ref:  (Cqkv_p, N)     VMEM scratch, persists across the qi axis
        qi = pl.program_id(1)

        # Fused q/k/v (+ denominator ones-row) projection: one bf16 MXU matmul
        # with f32 accumulation per batch element.
        @pl.when(qi == 0)
        def _():
            x_bf = x_ref[...].astype(mxu_dtype)
            qkv = jnp.dot(w_ref[...], x_bf, preferred_element_type=jnp.float32)
            qkv = qkv + b_ref[...]
            qkv_ref[...] = qkv.astype(qkv_ref.dtype)

        if num_q_tiles == 1:
            q_start = 0                       # static slice
        else:
            q_start = pl.multiple_of(qi * tq, 128)

        # Section offsets are multiples of 16 -> zero-cost bf16 views.
        q_t = qkv_ref[0:c2p, pl.ds(q_start, tq)]          # (C2p, Tq)
        k = qkv_ref[c2p:2 * c2p, :]                        # (C2p, N)
        v_ext = qkv_ref[2 * c2p:2 * c2p + cvp, :]          # (Cvp, N); row c == 1

        # energy[i, j] = sum_c q[c, i] k[c, j]; zero padded rows add nothing.
        energy = lax.dot_general(
            q_t, k, dimension_numbers=(((0,), (0,)), ((), ())),
            preferred_element_type=jnp.float32)            # (Tq, N) f32

        row_max = jnp.max(energy, axis=-1, keepdims=True)
        z = energy - row_max                               # f32, <= 0
        if exp_in_bf16:
            p = jnp.exp(z.astype(jnp.bfloat16))            # bf16 EUP (v6e/v7x)
        else:
            p = jnp.exp(z).astype(mxu_dtype)               # f32 exp (v5e path)

        # Un-normalized V.P and the softmax denominator in ONE MXU contraction:
        # row c of v_ext is all-ones, so out_ext[c, :] = sum_j p[:, j].
        out_ext = lax.dot_general(
            v_ext, p, dimension_numbers=(((1,), (1,)), ((), ())),
            preferred_element_type=jnp.float32)            # (Cvp, Tq) f32

        denom = out_ext[c:c + 1, :]                        # (1, Tq)
        scale = gamma_ref[0] * pl.reciprocal(denom, approx=True)
        x_t = x_ref[:, pl.ds(q_start, tq)]                 # (C, Tq) f32 residual
        o_ref[...] = (out_ext[0:c, :] * scale + x_t).astype(o_ref.dtype)

    return kernel


def self_attn_pallas(x, wq, bq, wk, bk, wv, bv, gamma, *,
                     q_tile=None, mxu_dtype=jnp.bfloat16, exp_in_bf16=None):
    """x: (B, C, W, H) float32.  Returns (B, C, W, H)."""
    B, C, W, H = x.shape
    N = W * H
    C2 = wq.shape[0]

    # Pad each section to a multiple of 16 rows (bf16 sublane packing) so the
    # in-kernel slices of the qkv scratch are aligned views.  The value section
    # gets one extra all-ones row (weight 0 / bias 1) for the fused denominator.
    C2p = _round_up(max(C2, 1), 16)
    Cvp = _round_up(C + 1, 16)
    Cqkv_p = 2 * C2p + Cvp

    vmem_cap = _vmem_capacity_bytes()
    if exp_in_bf16 is None:
        exp_in_bf16 = _bf16_eup_ok() and mxu_dtype == jnp.bfloat16
    if q_tile is None:
        q_tile = _choose_query_tile(N, C, Cvp, Cqkv_p, vmem_cap)
    assert N % q_tile == 0, "query tile must divide N"
    num_q_tiles = N // q_tile

    x_flat = x.reshape(B, C, N)

    def _pad_rows(w, rows):
        return jnp.pad(w, ((0, rows - w.shape[0]), (0, 0)))

    def _pad_vec(v, rows):
        return jnp.pad(v, (0, rows - v.shape[0]))

    w_all = jnp.concatenate(
        [_pad_rows(wq, C2p), _pad_rows(wk, C2p), _pad_rows(wv, Cvp)],
        axis=0).astype(mxu_dtype)                                   # (Cqkv_p, C)

    bv_ext = jnp.concatenate([bv, jnp.ones((1,), bv.dtype)])        # ones-row bias
    b_all = jnp.concatenate(
        [_pad_vec(bq, C2p), _pad_vec(bk, C2p), _pad_vec(bv_ext, Cvp)],
        axis=0).reshape(Cqkv_p, 1).astype(jnp.float32)

    gamma_arr = jnp.asarray(gamma, jnp.float32).reshape(1,)

    kernel = _make_kernel(C, C2p, Cvp, N, q_tile, mxu_dtype, exp_in_bf16)

    vmem_limit = min(vmem_cap * 3 // 4, 96 * 1024 * 1024)

    out_flat = pl.pallas_call(
        kernel,
        out_shape=jax.ShapeDtypeStruct((B, C, N), x.dtype),
        grid_spec=pltpu.PrefetchScalarGridSpec(
            num_scalar_prefetch=0,
            grid=(B, num_q_tiles),
            in_specs=[
                pl.BlockSpec((None, C, N), lambda b, qi: (b, 0, 0)),   # x (per batch)
                pl.BlockSpec((Cqkv_p, C), lambda b, qi: (0, 0)),       # fused W (bf16)
                pl.BlockSpec((Cqkv_p, 1), lambda b, qi: (0, 0)),       # fused bias
                pl.BlockSpec(memory_space=pltpu.MemorySpace.SMEM),     # gamma scalar
            ],
            out_specs=pl.BlockSpec((None, C, q_tile), lambda b, qi: (b, 0, qi)),
            scratch_shapes=[pltpu.VMEM((Cqkv_p, N), mxu_dtype)],
        ),
        compiler_params=pltpu.CompilerParams(
            dimension_semantics=("parallel", "arbitrary"),
            vmem_limit_bytes=vmem_limit),
    )(x_flat, w_all, b_all, gamma_arr)

    return out_flat.reshape(B, C, W, H)


def self_attn_reference(x, wq, bq, wk, bk, wv, bv, gamma):
    """Pure-JAX f32 reference mirroring the PyTorch forward."""
    B, C, W, H = x.shape
    N = W * H
    xf = x.reshape(B, C, N)
    q = jnp.einsum("oc,bcn->bon", wq, xf) + bq[None, :, None]   # (B, C2, N)
    k = jnp.einsum("oc,bcn->bon", wk, xf) + bk[None, :, None]   # (B, C2, N)
    v = jnp.einsum("oc,bcn->bon", wv, xf) + bv[None, :, None]   # (B, C,  N)
    energy = jnp.einsum("bci,bcj->bij", q, k)                   # (B, N, N)
    attention = jax.nn.softmax(energy, axis=-1)
    out = jnp.einsum("bcj,bij->bci", v, attention)              # (B, C, N)
    out = out.reshape(B, C, W, H)
    return gamma * out + x


if __name__ == "__main__":
    B, C, W, H = 2, 4, 16, 16
    C2 = C // 2

    key = jax.random.PRNGKey(0)
    kx, kwq, kbq, kwk, kbk, kwv, kbv = jax.random.split(key, 7)

    x = jax.random.normal(kx, (B, C, W, H), dtype=jnp.float32)

    # 1x1 conv weights squeezed to (Cout, Cin).
    wq = 0.2 * jax.random.normal(kwq, (C2, C), dtype=jnp.float32)
    bq = 0.1 * jax.random.normal(kbq, (C2,), dtype=jnp.float32)
    wk = 0.2 * jax.random.normal(kwk, (C2, C), dtype=jnp.float32)
    bk = 0.1 * jax.random.normal(kbk, (C2,), dtype=jnp.float32)
    wv = 0.2 * jax.random.normal(kwv, (C, C), dtype=jnp.float32)
    bv = 0.1 * jax.random.normal(kbv, (C,), dtype=jnp.float32)
    # nn.Parameter(torch.zeros(1)) -> gamma starts at 0; use a nonzero value so
    # the attention path is actually exercised numerically.
    gamma = jnp.float32(0.5)

    ref = self_attn_reference(x, wq, bq, wk, bk, wv, bv, gamma)

    # Default path (auto tile, bf16 exp where the chip supports it).
    out = self_attn_pallas(x, wq, bq, wk, bk, wv, bv, gamma)
    out = jax.block_until_ready(out)
    assert out.shape == (B, C, W, H)
    assert jnp.allclose(out, ref, atol=2e-2, rtol=2e-2), "mismatch vs reference"

    # Forced smaller query tile + f32-exp math path: exercises the multi-tile
    # loop with the persistent qkv scratch and the v5e-style softmax.
    out_t = self_attn_pallas(x, wq, bq, wk, bk, wv, bv, gamma,
                             q_tile=128, exp_in_bf16=False)
    out_t = jax.block_until_ready(out_t)
    assert jnp.allclose(out_t, ref, atol=2e-2, rtol=2e-2), "tiled mismatch vs reference"

    print("KERNEL_OK")
</pallas_src>

<mosaic_0001>
module attributes {stable_mosaic.version = 11 : i64} {
  func.func @kernel(%arg0: i32, %arg1: i32, %arg2: memref<1x4x256xf32, #tpu.memory_space<vmem>>, %arg3: memref<48x4xbf16, #tpu.memory_space<vmem>>, %arg4: memref<48x1xf32, #tpu.memory_space<vmem>>, %arg5: memref<1xf32, #tpu.memory_space<smem>>, %arg6: memref<1x4x256xf32, #tpu.memory_space<vmem>>, %arg7: memref<48x256xbf16, #tpu.memory_space<vmem>>) attributes {dimension_semantics = [#tpu.dimension_semantics<parallel>, #tpu.dimension_semantics<arbitrary>], iteration_bounds = array<i64: 2, 1>, scalar_prefetch = 0 : i64, scratch_operands = 1 : i64, tpu.core_type = #tpu.core_type<tc>, window_params = [{transform_indices = @transform_0, window_bounds = array<i64: 1, 4, 256>}, {pipeline_mode = #tpu.pipeline_mode<synchronous>, transform_indices = @transform_1, window_bounds = array<i64: 48, 4>}, {pipeline_mode = #tpu.pipeline_mode<synchronous>, transform_indices = @transform_2, window_bounds = array<i64: 48, 1>}, {transform_indices = @transform_3, window_bounds = array<i64: 1>}, {transform_indices = @transform_4, window_bounds = array<i64: 1, 4, 256>}]} {
    %c0_i32 = arith.constant 0 : i32
    %0 = arith.cmpi eq, %arg1, %c0_i32 : i32
    %1 = arith.extui %0 : i1 to i32
    %c0_i32_0 = arith.constant 0 : i32
    %2 = arith.cmpi ne, %1, %c0_i32_0 : i32
    scf.if %2 {
      %c0_13 = arith.constant 0 : index
      %c0_14 = arith.constant 0 : index
      %c0_15 = arith.constant 0 : index
      %28 = vector.load %arg2[%c0_13, %c0_14, %c0_15] : memref<1x4x256xf32, #tpu.memory_space<vmem>>, vector<1x4x256xf32>
      %29 = vector.shape_cast %28 : vector<1x4x256xf32> to vector<4x256xf32>
      %30 = arith.truncf %29 : vector<4x256xf32> to vector<4x256xbf16>
      %c0_16 = arith.constant 0 : index
      %c0_17 = arith.constant 0 : index
      %31 = vector.load %arg3[%c0_16, %c0_17] : memref<48x4xbf16, #tpu.memory_space<vmem>>, vector<48x4xbf16>
      %cst_18 = arith.constant dense<0.000000e+00> : vector<48x256xf32>
      %32 = tpu.matmul %31, %30, %cst_18 {dimension_numbers = #tpu.dot_dimension_numbers<[1], [0], [0], [1], [0, 0, 1, 1], [], []>} : vector<48x4xbf16>, vector<4x256xbf16>, vector<48x256xf32> -> vector<48x256xf32>
      %c0_19 = arith.constant 0 : index
      %c0_20 = arith.constant 0 : index
      %33 = vector.load %arg4[%c0_19, %c0_20] : memref<48x1xf32, #tpu.memory_space<vmem>>, vector<48x1xf32>
      %34 = vector.broadcast %33 : vector<48x1xf32> to vector<48x256xf32>
      %35 = arith.addf %32, %34 : vector<48x256xf32>
      %36 = arith.truncf %35 : vector<48x256xf32> to vector<48x256xbf16>
      %c0_21 = arith.constant 0 : index
      %c0_22 = arith.constant 0 : index
      %37 = vector.load %arg7[%c0_21, %c0_22] : memref<48x256xbf16, #tpu.memory_space<vmem>>, vector<48x256xbf16>
      tpu.vector_store %arg7[%c0_21, %c0_22], %36 {strides = array<i32>} : memref<48x256xbf16, #tpu.memory_space<vmem>>, vector<48x256xbf16>,
    } else {
    }
    %c0 = arith.constant 0 : index
    %c0_1 = arith.constant 0 : index
    %3 = vector.load %arg7[%c0, %c0_1] : memref<48x256xbf16, #tpu.memory_space<vmem>>, vector<16x256xbf16>
    %c16 = arith.constant 16 : index
    %c0_2 = arith.constant 0 : index
    %4 = vector.load %arg7[%c16, %c0_2] : memref<48x256xbf16, #tpu.memory_space<vmem>>, vector<16x256xbf16>
    %c32 = arith.constant 32 : index
    %c0_3 = arith.constant 0 : index
    %5 = vector.load %arg7[%c32, %c0_3] : memref<48x256xbf16, #tpu.memory_space<vmem>>, vector<16x256xbf16>
    %cst = arith.constant dense<0.000000e+00> : vector<256x256xf32>
    %6 = tpu.matmul %3, %4, %cst {dimension_numbers = #tpu.dot_dimension_numbers<[0], [0], [1], [1], [0, 1, 1, 1], [], []>} : vector<16x256xbf16>, vector<16x256xbf16>, vector<256x256xf32> -> vector<256x256xf32>
    %cst_4 = arith.constant dense<0xFF800000> : vector<256xf32>
    %7 = vector.multi_reduction <maximumf>, %6, %cst_4 [1] : vector<256x256xf32> to vector<256xf32>
    %8 = vector.shape_cast %7 : vector<256xf32> to vector<256x1xf32>
    %9 = vector.broadcast %8 : vector<256x1xf32> to vector<256x256xf32>
    %10 = arith.subf %6, %9 : vector<256x256xf32>
    %11 = arith.truncf %10 : vector<256x256xf32> to vector<256x256xbf16>
    %12 = math.exp %11 : vector<256x256xbf16>
    %cst_5 = arith.constant dense<0.000000e+00> : vector<16x256xf32>
    %13 = tpu.matmul %5, %12, %cst_5 {dimension_numbers = #tpu.dot_dimension_numbers<[1], [1], [0], [0], [0, 0, 1, 0], [], []>} : vector<16x256xbf16>, vector<256x256xbf16>, vector<16x256xf32> -> vector<16x256xf32>
    %14 = vector.extract_strided_slice %13 {offsets = [4, 0], sizes = [1, 256], strides = [1, 1]} : vector<16x256xf32> to vector<1x256xf32>
    %c0_6 = arith.constant 0 : index
    %15 = memref.load %arg5[%c0_6] : memref<1xf32, #tpu.memory_space<smem>>
    %16 = tpu.reciprocal %14 {approx = true} : vector<1x256xf32> -> vector<1x256xf32>
    %17 = vector.broadcast %15 : f32 to vector<1x256xf32>
    %18 = arith.mulf %17, %16 : vector<1x256xf32>
    %c0_7 = arith.constant 0 : index
    %c0_8 = arith.constant 0 : index
    %c0_9 = arith.constant 0 : index
    %19 = vector.load %arg2[%c0_7, %c0_8, %c0_9] : memref<1x4x256xf32, #tpu.memory_space<vmem>>, vector<1x4x256xf32>
    %20 = vector.shape_cast %19 : vector<1x4x256xf32> to vector<4x256xf32>
    %21 = vector.extract_strided_slice %13 {offsets = [0, 0], sizes = [4, 256], strides = [1, 1]} : vector<16x256xf32> to vector<4x256xf32>
    %22 = vector.broadcast %18 : vector<1x256xf32> to vector<4x256xf32>
    %23 = arith.mulf %21, %22 : vector<4x256xf32>
    %24 = arith.addf %23, %20 : vector<4x256xf32>
    %c0_10 = arith.constant 0 : index
    %c0_11 = arith.constant 0 : index
    %c0_12 = arith.constant 0 : index
    %25 = vector.load %arg6[%c0_10, %c0_11, %c0_12] : memref<1x4x256xf32, #tpu.memory_space<vmem>>, vector<1x4x256xf32>
    %26 = vector.shape_cast %25 : vector<1x4x256xf32> to vector<4x256xf32>
    %27 = vector.shape_cast %24 : vector<4x256xf32> to vector<1x4x256xf32>
    tpu.vector_store %arg6[%c0_10, %c0_11, %c0_12], %27 {strides = array<i32>} : memref<1x4x256xf32, #tpu.memory_space<vmem>>, vector<1x4x256xf32>,
    return
  }
  func.func @transform_0(%arg0: i32, %arg1: i32) -> (i32, i32, i32) {
    %c0_i32 = arith.constant 0 : i32
    %c0_i32_0 = arith.constant 0 : i32
    %c0_i32_1 = arith.constant 0 : i32
    return %arg0, %c0_i32, %c0_i32_0 : i32, i32, i32
  }
  func.func @transform_1(%arg0: i32, %arg1: i32) -> (i32, i32) {
    %c0_i32 = arith.constant 0 : i32
    %c0_i32_0 = arith.constant 0 : i32
    %c0_i32_1 = arith.constant 0 : i32
    return %c0_i32, %c0_i32_0 : i32, i32
  }
  func.func @transform_2(%arg0: i32, %arg1: i32) -> (i32, i32) {
    %c0_i32 = arith.constant 0 : i32
    %c0_i32_0 = arith.constant 0 : i32
    %c0_i32_1 = arith.constant 0 : i32
    return %c0_i32, %c0_i32_0 : i32, i32
  }
  func.func @transform_3(%arg0: i32, %arg1: i32) -> i32 {
    %c0_i32 = arith.constant 0 : i32
    %c0_i32_0 = arith.constant 0 : i32
    return %c0_i32 : i32
  }
  func.func @transform_4(%arg0: i32, %arg1: i32) -> (i32, i32, i32) {
    %c0_i32 = arith.constant 0 : i32
    %c0_i32_0 = arith.constant 0 : i32
    return %arg0, %c0_i32, %arg1 : i32, i32, i32
  }
}

</mosaic_0001>

<llo_original>
// kernel: tpu_custom_call.1
$region0: #{tpu_custom_call.1}
  #allocation0 [shape = 'u32[]', space=smem, size = 0x4, offset = 0x4, fixed_abs, tag = 'smem constant byte address 0x4 - core index']
  #allocation1 [shape = 'u32[72,128]{1,0:T(1,128)}', space=vmem, size = 0x9000, scoped, tag = 'internal scratch']
  #allocation2 [shape = 'bf16[48,256]{1,0:T(8,128)(2,1)}', space=vmem, size = 0x6000, scoped, tag = 'scratch operand']
  #allocation3 [shape = 'f32[1]{0:T(128)S(6)}', space=smem, size = 0x200, scoped, tag = 'scoped memory for tpu_custom_call.1']
  %s0 = inlined_call_operand.vmem [shape: f32[2,4,256], index: 0, kind: input, shape index: {}]
  %s1 = inlined_call_operand.vmem [shape: bf16[48,4], index: 1, kind: input, shape index: {}]
  %s2 = inlined_call_operand.vmem [shape: f32[48,1], index: 2, kind: input, shape index: {}]
  %s3 = inlined_call_operand.<no memory space> [shape: f32[1], index: 3, kind: input, shape index: {}]
  %s4 = inlined_call_operand.hbm [shape: f32[2,4,256], index: 4, kind: output, shape index: {}]
  %s5 = sld [smem:[#allocation0]]
  $region53: #{tpu_custom_call.1} parent=0
    _
  %s7 = ssub.s32 1, %s5
  %s8 = scalar_select 0, %s7, %s5
  %9 = sst [smem:[#allocation3]] %s3
  $region1: #{tpu_custom_call.1} parent=0
    #allocation4 [shape = 'u8[8192]{0}', space=vmem, size = 0x2000, scoped, tag = 'output window, operand 0']
    #allocation5 [shape = 's32[2]{0}', space=sflag, size = 0x8, scoped, tag = 'scoped memory for tpu_custom_call.1']
    %10 = vsyncpa [#allocation5], 0
    %s11 = scalar_lea.sflag [#allocation5], 1
    %12 = vsyncpa %s11, 0
    loop: start=0, step=1, limit=4
    $region2: #{tpu_custom_call.1} parent=1 // loop_pre_header
      _
    $region3: #{tpu_custom_call.1} parent=1 // loop_header
      %s14 = sphi 0, %s18
      %p15 = scmp.ge.s32.totalorder %s14, 4
      %s21 = sphi 0, %s33
      %s22 = sphi 0, %s29
      %s23 = sphi 0, %s21
      %s24 = sphi 0, %s22
      %s25 = sphi 0, %s23
      %s26 = sphi 0, %s24
      %s36 = sphi 0, %s38
      %s39 = sphi 0, %s36
      %s40 = sphi 0, %s39
      %s56 = sphi 0, %s40
      %s60 = sphi 0, %s60
      %s62 = sphi 0, %s60
      %s63 = sphi 0, %s62
      %s77 = sphi 0, %s63
      %s81 = sphi 0, %s81
      %s83 = sphi 0, %s81
      %s84 = sphi 0, %s83
      %s98 = sphi 0, %s84
      %s102 = sphi 0, %s102
      %s104 = sphi 0, %s102
      %s105 = sphi 0, %s104
      %s119 = sphi 0, %s105
      %s127 = sphi 0, %s129
      %s130 = sphi 0, %s127
      %s131 = sphi 0, %s130
      %s147 = sphi 0, %s131
    $region4: #{tpu_custom_call.1} parent=1 // loop_header_branch
      %17 = sbr.rel (%p15) target = $region8
    $region5: #{tpu_custom_call.1} parent=1 // loop_body
      %s19 = ssub.s32 %s14, 1
      %s20 = ssub.s32 %s14, 2
      %s27 = sadd.s32 1, %s22
      %p28 = scmp.ge.s32.totalorder %s27, 1
      %s29 = scalar_select %p28, 0, %s27
      %s30 = sadd.s32 1, %s21
      %s31 = scalar_select %p28, %s30, %s21
      %p32 = scmp.ge.s32.totalorder %s31, 2
      %s33 = scalar_select %p32, 0, %s31
      %s34 = ssub.s32 %s21, %s33
      %p35 = scmp.eq.s32.totalorder %s34, 0
      %s37 = sadd.s32 %s36, 1
      %s38 = scalar_select %p35, %s36, %s37
      %p41 = pneg %p35
      %p42 = scmp.eq.s32.totalorder %s14, 1
      %p43 = por %p41, %p42
      %p44 = scmp.ne.s32.totalorder %s36, %s39
      %p45 = scmp.eq.s32.totalorder %s14, 0
      %p46 = por %p44, %p45
      %p47 = scmp.ne.s32.totalorder %s36, %s39
      %p48 = scmp.eq.s32.totalorder %s19, 1
      %p49 = por %p47, %p48
      %p50 = scmp.ne.s32.totalorder %s39, %s40
      %p51 = scmp.eq.s32.totalorder %s19, 0
      %p52 = por %p50, %p51
      %p53 = scmp.ne.s32.totalorder %s39, %s40
      %p54 = scmp.eq.s32.totalorder %s20, 1
      %p55 = por %p53, %p54
      %p57 = scmp.ne.s32.totalorder %s40, %s56
      %p58 = scmp.eq.s32.totalorder %s20, 0
      %p59 = por %p57, %p58
      %s61 = sadd.s32 %s60, 1
      %p64 = scmp.eq.s32.totalorder %s14, 1
      %p65 = scmp.ne.s32.totalorder %s60, %s62
      %p66 = scmp.eq.s32.totalorder %s14, 0
      %p67 = por %p65, %p66
      %p68 = scmp.ne.s32.totalorder %s60, %s62
      %p69 = scmp.eq.s32.totalorder %s19, 1
      %p70 = por %p68, %p69
      %p71 = scmp.ne.s32.totalorder %s62, %s63
      %p72 = scmp.eq.s32.totalorder %s19, 0
      %p73 = por %p71, %p72
      %p74 = scmp.ne.s32.totalorder %s62, %s63
      %p75 = scmp.eq.s32.totalorder %s20, 1
      %p76 = por %p74, %p75
      %p78 = scmp.ne.s32.totalorder %s63, %s77
      %p79 = scmp.eq.s32.totalorder %s20, 0
      %p80 = por %p78, %p79
      %s82 = sadd.s32 %s81, 1
      %p85 = scmp.eq.s32.totalorder %s14, 1
      %p86 = scmp.ne.s32.totalorder %s81, %s83
      %p87 = scmp.eq.s32.totalorder %s14, 0
      %p88 = por %p86, %p87
      %p89 = scmp.ne.s32.totalorder %s81, %s83
      %p90 = scmp.eq.s32.totalorder %s19, 1
      %p91 = por %p89, %p90
      %p92 = scmp.ne.s32.totalorder %s83, %s84
      %p93 = scmp.eq.s32.totalorder %s19, 0
      %p94 = por %p92, %p93
      %p95 = scmp.ne.s32.totalorder %s83, %s84
      %p96 = scmp.eq.s32.totalorder %s20, 1
      %p97 = por %p95, %p96
      %p99 = scmp.ne.s32.totalorder %s84, %s98
      %p100 = scmp.eq.s32.totalorder %s20, 0
      %p101 = por %p99, %p100
      %s103 = sadd.s32 %s102, 1
      %p106 = scmp.eq.s32.totalorder %s14, 1
      %p107 = scmp.ne.s32.totalorder %s102, %s104
      %p108 = scmp.eq.s32.totalorder %s14, 0
      %p109 = por %p107, %p108
      %p110 = scmp.ne.s32.totalorder %s102, %s104
      %p111 = scmp.eq.s32.totalorder %s19, 1
      %p112 = por %p110, %p111
      %p113 = scmp.ne.s32.totalorder %s104, %s105
      %p114 = scmp.eq.s32.totalorder %s19, 0
      %p115 = por %p113, %p114
      %p116 = scmp.ne.s32.totalorder %s104, %s105
      %p117 = scmp.eq.s32.totalorder %s20, 1
      %p118 = por %p116, %p117
      %p120 = scmp.ne.s32.totalorder %s105, %s119
      %p121 = scmp.eq.s32.totalorder %s20, 0
      %p122 = por %p120, %p121
      %s123 = ssub.s32 %s21, %s33
      %s124 = ssub.s32 %s22, %s29
      %s125 = sor.u32 %s123, %s124
      %p126 = scmp.eq.s32.totalorder %s125, 0
      %s128 = sadd.s32 %s127, 1
      %s129 = scalar_select %p126, %s127, %s128
      %p132 = pneg %p126
      %p133 = scmp.eq.s32.totalorder %s14, 1
      %p134 = por %p132, %p133
      %p135 = scmp.ne.s32.totalorder %s127, %s130
      %p136 = scmp.eq.s32.totalorder %s14, 0
      %p137 = por %p135, %p136
      %p138 = scmp.ne.s32.totalorder %s127, %s130
      %p139 = scmp.eq.s32.totalorder %s19, 1
      %p140 = por %p138, %p139
      %p141 = scmp.ne.s32.totalorder %s130, %s131
      %p142 = scmp.eq.s32.totalorder %s19, 0
      %p143 = por %p141, %p142
      %p144 = scmp.ne.s32.totalorder %s130, %s131
      %p145 = scmp.eq.s32.totalorder %s20, 1
      %p146 = por %p144, %p145
      %p148 = scmp.ne.s32.totalorder %s131, %s147
      %p149 = scmp.eq.s32.totalorder %s20, 0
      %p150 = por %p148, %p149
      %p151 = scmp.le.s32.totalorder 1, %s14
      %p152 = scmp.lt.s32.totalorder %s14, 3
      %p153 = pnand %p151, %p152
      %p154 = pneg %p153
      // Predicated region
      $region9: #{tpu_custom_call.1} parent=5 // pred_check
        _
      $region10: #{tpu_custom_call.1} parent=5 // pred_check_branch
        %156 = sbr.rel (%p153) target = $region12
      $region11: #{tpu_custom_call.1} parent=5 // pred_region
        %s157 = ssub.s32 %s14, 1
        // Predicated region
        $region13: #{tpu_custom_call.1} parent=11 // pred_check
          %p158 = pneg %p73
        $region14: #{tpu_custom_call.1} parent=11 // pred_check_branch
          %160 = sbr.rel (%p158) target = $region16
        $region15: #{tpu_custom_call.1} parent=11 // pred_region
          _
        $region16: #{tpu_custom_call.1} parent=11 // pred_fallthru
          _
        // Predicated region
        $region17: #{tpu_custom_call.1} parent=11 // pred_check
          %p161 = pneg %p94
        $region18: #{tpu_custom_call.1} parent=11 // pred_check_branch
          %163 = sbr.rel (%p161) target = $region20
        $region19: #{tpu_custom_call.1} parent=11 // pred_region
          _
        $region20: #{tpu_custom_call.1} parent=11 // pred_fallthru
          _
        // Predicated region
        $region21: #{tpu_custom_call.1} parent=11 // pred_check
          %p164 = pneg %p115
        $region22: #{tpu_custom_call.1} parent=11 // pred_check_branch
          %166 = sbr.rel (%p164) target = $region24
        $region23: #{tpu_custom_call.1} parent=11 // pred_region
          _
        $region24: #{tpu_custom_call.1} parent=11 // pred_fallthru
          _
      $region12: #{tpu_custom_call.1} parent=5 // pred_fallthru
        _
      %p167 = scmp.lt.s32.totalorder %s14, 2
      // Predicated region
      $region25: #{tpu_custom_call.1} parent=5 // pred_check
        %p168 = pneg %p167
      $region26: #{tpu_custom_call.1} parent=5 // pred_check_branch
        %170 = sbr.rel (%p168) target = $region28
      $region27: #{tpu_custom_call.1} parent=5 // pred_region
        // Predicated region
        $region29: #{tpu_custom_call.1} parent=27 // pred_check
          %p171 = pneg %p46
        $region30: #{tpu_custom_call.1} parent=27 // pred_check_branch
          %173 = sbr.rel (%p171) target = $region32
        $region31: #{tpu_custom_call.1} parent=27 // pred_region
          %p174 = scmp.lt.s32.totalorder %s21, 1
          %s175 = scalar_select %p174, %s21, 1
          %s176 = smul.addr %s175, 2
          %s177 = smul.addr %s176, 4
          %s178 = scalar_lea.vmem %s0, %s177
        $region32: #{tpu_custom_call.1} parent=27 // pred_fallthru
          _
      $region28: #{tpu_custom_call.1} parent=5 // pred_fallthru
        _
      %p179 = scmp.le.s32.totalorder 1, %s14
      %p180 = scmp.lt.s32.totalorder %s14, 3
      %p181 = pnand %p179, %p180
      %p182 = pneg %p181
      // Predicated region
      $region33: #{tpu_custom_call.1} parent=5 // pred_check
        _
      $region34: #{tpu_custom_call.1} parent=5 // pred_check_branch
        %184 = sbr.rel (%p181) target = $region36
      $region35: #{tpu_custom_call.1} parent=5 // pred_region
        %s185 = ssub.s32 %s14, 1
        %p186 = scmp.lt.s32.totalorder %s23, 1
        %s187 = scalar_select %p186, %s23, 1
        %s188 = smul.addr %s187, 2
        %s189 = smul.addr %s188, 4
        %s190 = scalar_lea.vmem %s0, %s189
        %p191 = pneg %p52
        %p192 = pneg %p49
        %p193 = pneg %p73
        %p194 = pneg %p70
        %p195 = pneg %p94
        %p196 = pneg %p91
        %p197 = pneg %p115
        %p198 = pneg %p112
        %p199 = pneg %p143
        %p200 = pneg %p140
        %s201 = sand.u32 %s130, 1
        %s202 = scalar_lea.sflag [#allocation5], %s201
        %s203 = sand.u32 %s130, 1
        %s204 = smul.addr %s203, 8
        %s205 = scalar_lea.vmem [#allocation4], %s204
        %p206 = scmp.lt.s32.totalorder %s23, 1
        %s207 = scalar_select %p206, %s23, 1
        %s208 = smul.addr %s207, 2
        %s209 = smul.addr %s208, 4
        %s210 = scalar_lea.vmem %s0, %s209
        %s211 = smul.u32 2, %s24
        %p213 = scmp.eq.s32.totalorder %s24, 0
        // Predicated region
        $region37: #{tpu_custom_call.1} parent=35 // pred_check
          %p214 = pneg %p213
        $region38: #{tpu_custom_call.1} parent=35 // pred_check_branch
          %216 = sbr.rel (%p214) target = $region40
        $region39: #{tpu_custom_call.1} parent=35 // pred_region
          %v217 = vld [vmem:[%s210] sm:$0xff]
          %219 = vst [vmem:[#allocation1] ss:$2 sm:$0xff] %v217
          %v220 = vld.sshfl [vmem:[#allocation1] sm:$0xff pattern:$0x75316420]
          %v221 = vld.sshfl [vmem:[#allocation1 + $0x8] sm:$0xff pattern:$0x75316420]
          %v224 = vpack.c.bf16 %v220, %v220
          %v225 = vpack.c.bf16 %v221, %v221
          %v226 = vld [vmem:[%s1] sm:$0xf]
          %v227 = vld [vmem:[%s1 + $0x4] sm:$0xf]
          %v228 = vld [vmem:[%s1 + $0x8] sm:$0xf]
          %v229 = vld [vmem:[%s1 + $0xc] sm:$0xf]
          %v230 = vld [vmem:[%s1 + $0x10] sm:$0xf]
          %v231 = vld [vmem:[%s1 + $0x14] sm:$0xf]
          %v232 = vld [vmem:[%s2] sm:$0xff]
          %v233 = vld [vmem:[%s2 + $0x8] sm:$0xff]
          %v234 = vld [vmem:[%s2 + $0x10] sm:$0xff]
          %v235 = vld [vmem:[%s2 + $0x18] sm:$0xff]
          %v236 = vld [vmem:[%s2 + $0x20] sm:$0xff]
          %v237 = vld [vmem:[%s2 + $0x28] sm:$0xff]
          %239 = vset.pattern.permute.xlu0 0
          %240 = vperm.xlu0 %239, %v232
          %v241 = vpop.permute.xlu0 %240
          %244 = vset.pattern.permute.xlu0 0
          %245 = vperm.xlu0 %244, %v233
          %v246 = vpop.permute.xlu0 %245
          %249 = vset.pattern.permute.xlu0 0
          %250 = vperm.xlu0 %249, %v234
          %v251 = vpop.permute.xlu0 %250
          %254 = vset.pattern.permute.xlu0 0
          %255 = vperm.xlu0 %254, %v235
          %v256 = vpop.permute.xlu0 %255
          %259 = vset.pattern.permute.xlu0 0
          %260 = vperm.xlu0 %259, %v236
          %v261 = vpop.permute.xlu0 %260
          %264 = vset.pattern.permute.xlu0 0
          %265 = vperm.xlu0 %264, %v237
          %v266 = vpop.permute.xlu0 %265
          %v274 = vunpack.c.l.b16 %v226
          %v275 = vunpack.c.l.b16 %v227
          %v276 = vunpack.c.l.b16 %v228
          %v277 = vunpack.c.l.b16 %v229
          %v278 = vunpack.c.l.b16 %v230
          %v279 = vunpack.c.l.b16 %v231
          %v280 = vpack.c.b16 %v275, %v274
          %v281 = vpack.c.b16 %v277, %v276
          %v282 = vpack.c.b16 %v279, %v278
          %vm283 = vcmask 31744
          %v285 = vsel %vm283, %v280, 0
          %v288 = vsel %vm283, %v281, 0
          %v291 = vsel %vm283, %v282, 0
          %vm293 = vcmask 1041408
          %v295 = vsel %vm293, %v224, 0
          %v298 = vsel %vm293, %v225, 0
          %300 = vmatpush.bf16.msra.mxu0 0
          %301 = vmatpush.bf16.msra.mxu0 0
          %302 = vmatpush.bf16.msra.mxu0 0
          %303 = vmatpush.bf16.msra.mxu0 0
          %304 = vmatpush.bf16.msra.mxu0 0
          %305 = vmatpush.bf16.msra.mxu0 0
          %306 = vmatpush.bf16.msra.mxu0 0
          %307 = vmatpush.bf16.msra.mxu0 %v295
          %308 = vmatmul.bf16.gmra.mxu0 %v285
          %v309 = vpop.f32.mrf.mxu0
          %v310 = vadd.f32 %v241, %v309
          %v311 = vpop.f32.mrf.mxu0
          %v312 = vadd.f32 %v246, %v311
          %313 = vmatmul.bf16.gmra.mxu0 %v288
          %v314 = vpop.f32.mrf.mxu0
          %v315 = vadd.f32 %v251, %v314
          %v316 = vpop.f32.mrf.mxu0
          %v317 = vadd.f32 %v256, %v316
          %318 = vmatmul.bf16.gmra.mxu0 %v291
          %v319 = vpop.f32.mrf.mxu0
          %v320 = vadd.f32 %v261, %v319
          %v321 = vpop.f32.mrf.mxu0
          %v322 = vadd.f32 %v266, %v321
          %323 = vdwg.mxu0
          %324 = vmatpush.bf16.msra.mxu0 0
          %325 = vmatpush.bf16.msra.mxu0 0
          %326 = vmatpush.bf16.msra.mxu0 0
          %327 = vmatpush.bf16.msra.mxu0 0
          %328 = vmatpush.bf16.msra.mxu0 0
          %329 = vmatpush.bf16.msra.mxu0 0
          %330 = vmatpush.bf16.msra.mxu0 0
          %331 = vmatpush.bf16.msra.mxu0 %v298
          %332 = vmatmul.bf16.gmra.mxu0 %v285
          %v333 = vpop.f32.mrf.mxu0
          %v334 = vadd.f32 %v241, %v333
          %v335 = vpop.f32.mrf.mxu0
          %v336 = vadd.f32 %v246, %v335
          %337 = vmatmul.bf16.gmra.mxu0 %v288
          %v338 = vpop.f32.mrf.mxu0
          %v339 = vadd.f32 %v251, %v338
          %v340 = vpop.f32.mrf.mxu0
          %v341 = vadd.f32 %v256, %v340
          %342 = vmatmul.bf16.gmra.mxu0 %v291
          %v343 = vpop.f32.mrf.mxu0
          %v344 = vadd.f32 %v261, %v343
          %v345 = vpop.f32.mrf.mxu0
          %v346 = vadd.f32 %v266, %v345
          %347 = vdwg.mxu0
          %v348 = vpack.c.bf16 %v334, %v310
          %v349 = vpack.c.bf16 %v336, %v312
          %v350 = vpack.c.bf16 %v339, %v315
          %v351 = vpack.c.bf16 %v341, %v317
          %v352 = vpack.c.bf16 %v344, %v320
          %v353 = vpack.c.bf16 %v346, %v322
          %354 = vst [vmem:[#allocation2] sm:$0xff] %v348
          %355 = vst [vmem:[#allocation2 + $0x8] sm:$0xff] %v349
          %356 = vst [vmem:[#allocation2 + $0x10] sm:$0xff] %v350
          %357 = vst [vmem:[#allocation2 + $0x18] sm:$0xff] %v351
          %358 = vst [vmem:[#allocation2 + $0x20] sm:$0xff] %v352
          %359 = vst [vmem:[#allocation2 + $0x28] sm:$0xff] %v353
        $region40: #{tpu_custom_call.1} parent=35 // pred_fallthru
          _
        %v360 = vld [vmem:[#allocation2] sm:$0xff]
        %v361 = vld [vmem:[#allocation2 + $0x8] sm:$0xff]
        %v362 = vld [vmem:[#allocation2 + $0x10] sm:$0xff]
        %v363 = vld [vmem:[#allocation2 + $0x18] sm:$0xff]
        %v364 = vld [vmem:[#allocation2 + $0x20] sm:$0xff]
        %v365 = vld [vmem:[#allocation2 + $0x28] sm:$0xff]
        %v368 = vunpack.c.l.b16 %v360
        %v369 = vunpack.c.h.b16 %v360
        %v370 = vunpack.c.l.b16 %v361
        %v371 = vunpack.c.h.b16 %v361
        %v372 = vpack.c.b16 %v370, %v368
        %v373 = vpack.c.b16 %v371, %v369
        %376 = vxpose.binary.xlu0.c.b16.start [1/16] %v373, %v372, 128
        %377 = vxpose.binary.xlu0.c.b16.cont [2/16] 0, 0, 128
        %378 = vxpose.binary.xlu0.c.b16.cont [3/16] 0, 0, 128
        %379 = vxpose.binary.xlu0.c.b16.cont [4/16] 0, 0, 128
        %380 = vxpose.binary.xlu0.c.b16.cont [5/16] 0, 0, 128
        %381 = vxpose.binary.xlu0.c.b16.cont [6/16] 0, 0, 128
        %382 = vxpose.binary.xlu0.c.b16.cont [7/16] 0, 0, 128
        %383 = vxpose.binary.xlu0.c.b16.end [8/16] 0, 0, 128
        %v384 = vpop.trf.xlu0
        %v385 = vpop.trf.xlu0
        %v386 = vpop.trf.xlu0
        %v387 = vpop.trf.xlu0
        %v388 = vpop.trf.xlu0
        %v389 = vpop.trf.xlu0
        %v390 = vpop.trf.xlu0
        %v391 = vpop.trf.xlu0
        %v392 = vpop.trf.xlu0
        %v393 = vpop.trf.xlu0
        %v394 = vpop.trf.xlu0
        %v395 = vpop.trf.xlu0
        %v396 = vpop.trf.xlu0
        %v397 = vpop.trf.xlu0
        %v398 = vpop.trf.xlu0
        %v399 = vpop.trf.xlu0
        %v402 = vunpack.c.l.b16 %v362
        %v403 = vunpack.c.h.b16 %v362
        %v404 = vunpack.c.l.b16 %v363
        %v405 = vunpack.c.h.b16 %v363
        %v406 = vpack.c.b16 %v404, %v402
        %v407 = vpack.c.b16 %v405, %v403
        %vm410 = vcmask 130048
        %v412 = vsel %vm410, %v384, 0
        %v415 = vsel %vm410, %v386, 0
        %v418 = vsel %vm410, %v388, 0
        %v421 = vsel %vm410, %v390, 0
        %v424 = vsel %vm410, %v392, 0
        %v427 = vsel %vm410, %v394, 0
        %v430 = vsel %vm410, %v396, 0
        %v433 = vsel %vm410, %v398, 0
        %v436 = vsel %vm410, %v385, 0
        %v439 = vsel %vm410, %v387, 0
        %v442 = vsel %vm410, %v389, 0
        %v445 = vsel %vm410, %v391, 0
        %v448 = vsel %vm410, %v393, 0
        %v451 = vsel %vm410, %v395, 0
        %v454 = vsel %vm410, %v397, 0
        %v457 = vsel %vm410, %v399, 0
        %459 = vmatpush.bf16.msra.mxu0 0
        %460 = vmatpush.bf16.msra.mxu0 0
        %461 = vmatpush.bf16.msra.mxu0 0
        %462 = vmatpush.bf16.msra.mxu0 0
        %463 = vmatpush.bf16.msra.mxu0 0
        %464 = vmatpush.bf16.msra.mxu0 0
        %465 = vmatpush.bf16.msra.mxu0 0
        %466 = vmatpush.bf16.msra.mxu0 %v406
        %467 = vmatmul.bf16.gmra.mxu0 %v412
        %v468 = vpop.f32.mrf.mxu0
        %v469 = vadd.f32 0.0, %v468
        %v470 = vpop.f32.mrf.mxu0
        %v471 = vadd.f32 0.0, %v470
        %472 = vmatmul.bf16.gmra.mxu0 %v415
        %v473 = vpop.f32.mrf.mxu0
        %v474 = vadd.f32 0.0, %v473
        %v475 = vpop.f32.mrf.mxu0
        %v476 = vadd.f32 0.0, %v475
        %477 = vmatmul.bf16.gmra.mxu0 %v418
        %v478 = vpop.f32.mrf.mxu0
        %v479 = vadd.f32 0.0, %v478
        %v480 = vpop.f32.mrf.mxu0
        %v481 = vadd.f32 0.0, %v480
        %482 = vmatmul.bf16.gmra.mxu0 %v421
        %v483 = vpop.f32.mrf.mxu0
        %v484 = vadd.f32 0.0, %v483
        %v485 = vpop.f32.mrf.mxu0
        %v486 = vadd.f32 0.0, %v485
        %487 = vmatmul.bf16.gmra.mxu0 %v424
        %v488 = vpop.f32.mrf.mxu0
        %v489 = vadd.f32 0.0, %v488
        %v490 = vpop.f32.mrf.mxu0
        %v491 = vadd.f32 0.0, %v490
        %492 = vmatmul.bf16.gmra.mxu0 %v427
        %v493 = vpop.f32.mrf.mxu0
        %v494 = vadd.f32 0.0, %v493
        %v495 = vpop.f32.mrf.mxu0
        %v496 = vadd.f32 0.0, %v495
        %497 = vmatmul.bf16.gmra.mxu0 %v430
        %v498 = vpop.f32.mrf.mxu0
        %v499 = vadd.f32 0.0, %v498
        %v500 = vpop.f32.mrf.mxu0
        %v501 = vadd.f32 0.0, %v500
        %502 = vmatmul.bf16.gmra.mxu0 %v433
        %v503 = vpop.f32.mrf.mxu0
        %v504 = vadd.f32 0.0, %v503
        %v505 = vpop.f32.mrf.mxu0
        %v506 = vadd.f32 0.0, %v505
        %507 = vmatmul.bf16.gmra.mxu0 %v436
        %v508 = vpop.f32.mrf.mxu0
        %v509 = vadd.f32 0.0, %v508
        %v510 = vpop.f32.mrf.mxu0
        %v511 = vadd.f32 0.0, %v510
        %512 = vmatmul.bf16.gmra.mxu0 %v439
        %v513 = vpop.f32.mrf.mxu0
        %v514 = vadd.f32 0.0, %v513
        %v515 = vpop.f32.mrf.mxu0
        %v516 = vadd.f32 0.0, %v515
        %517 = vmatmul.bf16.gmra.mxu0 %v442
        %v518 = vpop.f32.mrf.mxu0
        %v519 = vadd.f32 0.0, %v518
        %v520 = vpop.f32.mrf.mxu0
        %v521 = vadd.f32 0.0, %v520
        %522 = vmatmul.bf16.gmra.mxu0 %v445
        %v523 = vpop.f32.mrf.mxu0
        %v524 = vadd.f32 0.0, %v523
        %v525 = vpop.f32.mrf.mxu0
        %v526 = vadd.f32 0.0, %v525
        %527 = vmatmul.bf16.gmra.mxu0 %v448
        %v528 = vpop.f32.mrf.mxu0
        %v529 = vadd.f32 0.0, %v528
        %v530 = vpop.f32.mrf.mxu0
        %v531 = vadd.f32 0.0, %v530
        %532 = vmatmul.bf16.gmra.mxu0 %v451
        %v533 = vpop.f32.mrf.mxu0
        %v534 = vadd.f32 0.0, %v533
        %v535 = vpop.f32.mrf.mxu0
        %v536 = vadd.f32 0.0, %v535
        %537 = vmatmul.bf16.gmra.mxu0 %v454
        %v538 = vpop.f32.mrf.mxu0
        %v539 = vadd.f32 0.0, %v538
        %v540 = vpop.f32.mrf.mxu0
        %v541 = vadd.f32 0.0, %v540
        %542 = vmatmul.bf16.gmra.mxu0 %v457
        %v543 = vpop.f32.mrf.mxu0
        %v544 = vadd.f32 0.0, %v543
        %v545 = vpop.f32.mrf.mxu0
        %v546 = vadd.f32 0.0, %v545
        %547 = vdwg.mxu0
        %548 = vmatpush.bf16.msra.mxu0 0
        %549 = vmatpush.bf16.msra.mxu0 0
        %550 = vmatpush.bf16.msra.mxu0 0
        %551 = vmatpush.bf16.msra.mxu0 0
        %552 = vmatpush.bf16.msra.mxu0 0
        %553 = vmatpush.bf16.msra.mxu0 0
        %554 = vmatpush.bf16.msra.mxu0 0
        %555 = vmatpush.bf16.msra.mxu0 %v407
        %556 = vmatmul.bf16.gmra.mxu0 %v412
        %v557 = vpop.f32.mrf.mxu0
        %v558 = vadd.f32 0.0, %v557
        %v559 = vpop.f32.mrf.mxu0
        %v560 = vadd.f32 0.0, %v559
        %561 = vmatmul.bf16.gmra.mxu0 %v415
        %v562 = vpop.f32.mrf.mxu0
        %v563 = vadd.f32 0.0, %v562
        %v564 = vpop.f32.mrf.mxu0
        %v565 = vadd.f32 0.0, %v564
        %566 = vmatmul.bf16.gmra.mxu0 %v418
        %v567 = vpop.f32.mrf.mxu0
        %v568 = vadd.f32 0.0, %v567
        %v569 = vpop.f32.mrf.mxu0
        %v570 = vadd.f32 0.0, %v569
        %571 = vmatmul.bf16.gmra.mxu0 %v421
        %v572 = vpop.f32.mrf.mxu0
        %v573 = vadd.f32 0.0, %v572
        %v574 = vpop.f32.mrf.mxu0
        %v575 = vadd.f32 0.0, %v574
        %576 = vmatmul.bf16.gmra.mxu0 %v424
        %v577 = vpop.f32.mrf.mxu0
        %v578 = vadd.f32 0.0, %v577
        %v579 = vpop.f32.mrf.mxu0
        %v580 = vadd.f32 0.0, %v579
        %581 = vmatmul.bf16.gmra.mxu0 %v427
        %v582 = vpop.f32.mrf.mxu0
        %v583 = vadd.f32 0.0, %v582
        %v584 = vpop.f32.mrf.mxu0
        %v585 = vadd.f32 0.0, %v584
        %586 = vmatmul.bf16.gmra.mxu0 %v430
        %v587 = vpop.f32.mrf.mxu0
        %v588 = vadd.f32 0.0, %v587
        %v589 = vpop.f32.mrf.mxu0
        %v590 = vadd.f32 0.0, %v589
        %591 = vmatmul.bf16.gmra.mxu0 %v433
        %v592 = vpop.f32.mrf.mxu0
        %v593 = vadd.f32 0.0, %v592
        %v594 = vpop.f32.mrf.mxu0
        %v595 = vadd.f32 0.0, %v594
        %596 = vmatmul.bf16.gmra.mxu0 %v436
        %v597 = vpop.f32.mrf.mxu0
        %v598 = vadd.f32 0.0, %v597
        %v599 = vpop.f32.mrf.mxu0
        %v600 = vadd.f32 0.0, %v599
        %601 = vmatmul.bf16.gmra.mxu0 %v439
        %v602 = vpop.f32.mrf.mxu0
        %v603 = vadd.f32 0.0, %v602
        %v604 = vpop.f32.mrf.mxu0
        %v605 = vadd.f32 0.0, %v604
        %606 = vmatmul.bf16.gmra.mxu0 %v442
        %v607 = vpop.f32.mrf.mxu0
        %v608 = vadd.f32 0.0, %v607
        %v609 = vpop.f32.mrf.mxu0
        %v610 = vadd.f32 0.0, %v609
        %611 = vmatmul.bf16.gmra.mxu0 %v445
        %v612 = vpop.f32.mrf.mxu0
        %v613 = vadd.f32 0.0, %v612
        %v614 = vpop.f32.mrf.mxu0
        %v615 = vadd.f32 0.0, %v614
        %616 = vmatmul.bf16.gmra.mxu0 %v448
        %v617 = vpop.f32.mrf.mxu0
        %v618 = vadd.f32 0.0, %v617
        %v619 = vpop.f32.mrf.mxu0
        %v620 = vadd.f32 0.0, %v619
        %621 = vmatmul.bf16.gmra.mxu0 %v451
        %v622 = vpop.f32.mrf.mxu0
        %v623 = vadd.f32 0.0, %v622
        %v624 = vpop.f32.mrf.mxu0
        %v625 = vadd.f32 0.0, %v624
        %626 = vmatmul.bf16.gmra.mxu0 %v454
        %v627 = vpop.f32.mrf.mxu0
        %v628 = vadd.f32 0.0, %v627
        %v629 = vpop.f32.mrf.mxu0
        %v630 = vadd.f32 0.0, %v629
        %631 = vmatmul.bf16.gmra.mxu0 %v457
        %v632 = vpop.f32.mrf.mxu0
        %v633 = vadd.f32 0.0, %v632
        %v634 = vpop.f32.mrf.mxu0
        %v635 = vadd.f32 0.0, %v634
        %636 = vdwg.mxu0
        %v637 = vmax.f32 %v469, %v558
        %638 = vmax.xlane.f32.xlu0 %v637
        %v639 = vpop.xlane.xlu0 %638
        %v640 = vmax.f32 %v471, %v560
        %641 = vmax.xlane.f32.xlu0 %v640
        %v642 = vpop.xlane.xlu0 %641
        %v643 = vmax.f32 %v474, %v563
        %644 = vmax.xlane.f32.xlu0 %v643
        %v645 = vpop.xlane.xlu0 %644
        %v646 = vmax.f32 %v476, %v565
        %647 = vmax.xlane.f32.xlu0 %v646
        %v648 = vpop.xlane.xlu0 %647
        %v649 = vmax.f32 %v479, %v568
        %650 = vmax.xlane.f32.xlu0 %v649
        %v651 = vpop.xlane.xlu0 %650
        %v652 = vmax.f32 %v481, %v570
        %653 = vmax.xlane.f32.xlu0 %v652
        %v654 = vpop.xlane.xlu0 %653
        %v655 = vmax.f32 %v484, %v573
        %656 = vmax.xlane.f32.xlu0 %v655
        %v657 = vpop.xlane.xlu0 %656
        %v658 = vmax.f32 %v486, %v575
        %659 = vmax.xlane.f32.xlu0 %v658
        %v660 = vpop.xlane.xlu0 %659
        %v661 = vmax.f32 %v489, %v578
        %662 = vmax.xlane.f32.xlu0 %v661
        %v663 = vpop.xlane.xlu0 %662
        %v664 = vmax.f32 %v491, %v580
        %665 = vmax.xlane.f32.xlu0 %v664
        %v666 = vpop.xlane.xlu0 %665
        %v667 = vmax.f32 %v494, %v583
        %668 = vmax.xlane.f32.xlu0 %v667
        %v669 = vpop.xlane.xlu0 %668
        %v670 = vmax.f32 %v496, %v585
        %671 = vmax.xlane.f32.xlu0 %v670
        %v672 = vpop.xlane.xlu0 %671
        %v673 = vmax.f32 %v499, %v588
        %674 = vmax.xlane.f32.xlu0 %v673
        %v675 = vpop.xlane.xlu0 %674
        %v676 = vmax.f32 %v501, %v590
        %677 = vmax.xlane.f32.xlu0 %v676
        %v678 = vpop.xlane.xlu0 %677
        %v679 = vmax.f32 %v504, %v593
        %680 = vmax.xlane.f32.xlu0 %v679
        %v681 = vpop.xlane.xlu0 %680
        %v682 = vmax.f32 %v506, %v595
        %683 = vmax.xlane.f32.xlu0 %v682
        %v684 = vpop.xlane.xlu0 %683
        %v685 = vmax.f32 %v509, %v598
        %686 = vmax.xlane.f32.xlu0 %v685
        %v687 = vpop.xlane.xlu0 %686
        %v688 = vmax.f32 %v511, %v600
        %689 = vmax.xlane.f32.xlu0 %v688
        %v690 = vpop.xlane.xlu0 %689
        %v691 = vmax.f32 %v514, %v603
        %692 = vmax.xlane.f32.xlu0 %v691
        %v693 = vpop.xlane.xlu0 %692
        %v694 = vmax.f32 %v516, %v605
        %695 = vmax.xlane.f32.xlu0 %v694
        %v696 = vpop.xlane.xlu0 %695
        %v697 = vmax.f32 %v519, %v608
        %698 = vmax.xlane.f32.xlu0 %v697
        %v699 = vpop.xlane.xlu0 %698
        %v700 = vmax.f32 %v521, %v610
        %701 = vmax.xlane.f32.xlu0 %v700
        %v702 = vpop.xlane.xlu0 %701
        %v703 = vmax.f32 %v524, %v613
        %704 = vmax.xlane.f32.xlu0 %v703
        %v705 = vpop.xlane.xlu0 %704
        %v706 = vmax.f32 %v526, %v615
        %707 = vmax.xlane.f32.xlu0 %v706
        %v708 = vpop.xlane.xlu0 %707
        %v709 = vmax.f32 %v529, %v618
        %710 = vmax.xlane.f32.xlu0 %v709
        %v711 = vpop.xlane.xlu0 %710
        %v712 = vmax.f32 %v531, %v620
        %713 = vmax.xlane.f32.xlu0 %v712
        %v714 = vpop.xlane.xlu0 %713
        %v715 = vmax.f32 %v534, %v623
        %716 = vmax.xlane.f32.xlu0 %v715
        %v717 = vpop.xlane.xlu0 %716
        %v718 = vmax.f32 %v536, %v625
        %719 = vmax.xlane.f32.xlu0 %v718
        %v720 = vpop.xlane.xlu0 %719
        %v721 = vmax.f32 %v539, %v628
        %722 = vmax.xlane.f32.xlu0 %v721
        %v723 = vpop.xlane.xlu0 %722
        %v724 = vmax.f32 %v541, %v630
        %725 = vmax.xlane.f32.xlu0 %v724
        %v726 = vpop.xlane.xlu0 %725
        %v727 = vmax.f32 %v544, %v633
        %728 = vmax.xlane.f32.xlu0 %v727
        %v729 = vpop.xlane.xlu0 %728
        %v730 = vmax.f32 %v546, %v635
        %731 = vmax.xlane.f32.xlu0 %v730
        %v732 = vpop.xlane.xlu0 %731
        %v733 = vsub.f32 %v469, %v639
        %v734 = vsub.f32 %v558, %v639
        %v735 = vsub.f32 %v471, %v642
        %v736 = vsub.f32 %v560, %v642
        %v737 = vsub.f32 %v474, %v645
        %v738 = vsub.f32 %v563, %v645
        %v739 = vsub.f32 %v476, %v648
        %v740 = vsub.f32 %v565, %v648
        %v741 = vsub.f32 %v479, %v651
        %v742 = vsub.f32 %v568, %v651
        %v743 = vsub.f32 %v481, %v654
        %v744 = vsub.f32 %v570, %v654
        %v745 = vsub.f32 %v484, %v657
        %v746 = vsub.f32 %v573, %v657
        %v747 = vsub.f32 %v486, %v660
        %v748 = vsub.f32 %v575, %v660
        %v749 = vsub.f32 %v489, %v663
        %v750 = vsub.f32 %v578, %v663
        %v751 = vsub.f32 %v491, %v666
        %v752 = vsub.f32 %v580, %v666
        %v753 = vsub.f32 %v494, %v669
        %v754 = vsub.f32 %v583, %v669
        %v755 = vsub.f32 %v496, %v672
        %v756 = vsub.f32 %v585, %v672
        %v757 = vsub.f32 %v499, %v675
        %v758 = vsub.f32 %v588, %v675
        %v759 = vsub.f32 %v501, %v678
        %v760 = vsub.f32 %v590, %v678
        %v761 = vsub.f32 %v504, %v681
        %v762 = vsub.f32 %v593, %v681
        %v763 = vsub.f32 %v506, %v684
        %v764 = vsub.f32 %v595, %v684
        %v765 = vsub.f32 %v509, %v687
        %v766 = vsub.f32 %v598, %v687
        %v767 = vsub.f32 %v511, %v690
        %v768 = vsub.f32 %v600, %v690
        %v769 = vsub.f32 %v514, %v693
        %v770 = vsub.f32 %v603, %v693
        %v771 = vsub.f32 %v516, %v696
        %v772 = vsub.f32 %v605, %v696
        %v773 = vsub.f32 %v519, %v699
        %v774 = vsub.f32 %v608, %v699
        %v775 = vsub.f32 %v521, %v702
        %v776 = vsub.f32 %v610, %v702
        %v777 = vsub.f32 %v524, %v705
        %v778 = vsub.f32 %v613, %v705
        %v779 = vsub.f32 %v526, %v708
        %v780 = vsub.f32 %v615, %v708
        %v781 = vsub.f32 %v529, %v711
        %v782 = vsub.f32 %v618, %v711
        %v783 = vsub.f32 %v531, %v714
        %v784 = vsub.f32 %v620, %v714
        %v785 = vsub.f32 %v534, %v717
        %v786 = vsub.f32 %v623, %v717
        %v787 = vsub.f32 %v536, %v720
        %v788 = vsub.f32 %v625, %v720
        %v789 = vsub.f32 %v539, %v723
        %v790 = vsub.f32 %v628, %v723
        %v791 = vsub.f32 %v541, %v726
        %v792 = vsub.f32 %v630, %v726
        %v793 = vsub.f32 %v544, %v729
        %v794 = vsub.f32 %v633, %v729
        %v795 = vsub.f32 %v546, %v732
        %v796 = vsub.f32 %v635, %v732
        %v797 = vpack.c.bf16 %v735, %v733
        %v798 = vpack.c.bf16 %v736, %v734
        %v799 = vpack.c.bf16 %v739, %v737
        %v800 = vpack.c.bf16 %v740, %v738
        %v801 = vpack.c.bf16 %v743, %v741
        %v802 = vpack.c.bf16 %v744, %v742
        %v803 = vpack.c.bf16 %v747, %v745
        %v804 = vpack.c.bf16 %v748, %v746
        %v805 = vpack.c.bf16 %v751, %v749
        %v806 = vpack.c.bf16 %v752, %v750
        %v807 = vpack.c.bf16 %v755, %v753
        %v808 = vpack.c.bf16 %v756, %v754
        %v809 = vpack.c.bf16 %v759, %v757
        %v810 = vpack.c.bf16 %v760, %v758
        %v811 = vpack.c.bf16 %v763, %v761
        %v812 = vpack.c.bf16 %v764, %v762
        %v813 = vpack.c.bf16 %v767, %v765
        %v814 = vpack.c.bf16 %v768, %v766
        %v815 = vpack.c.bf16 %v771, %v769
        %v816 = vpack.c.bf16 %v772, %v770
        %v817 = vpack.c.bf16 %v775, %v773
        %v818 = vpack.c.bf16 %v776, %v774
        %v819 = vpack.c.bf16 %v779, %v777
        %v820 = vpack.c.bf16 %v780, %v778
        %v821 = vpack.c.bf16 %v783, %v781
        %v822 = vpack.c.bf16 %v784, %v782
        %v823 = vpack.c.bf16 %v787, %v785
        %v824 = vpack.c.bf16 %v788, %v786
        %v825 = vpack.c.bf16 %v791, %v789
        %v826 = vpack.c.bf16 %v792, %v790
        %v827 = vpack.c.bf16 %v795, %v793
        %v828 = vpack.c.bf16 %v796, %v794
        %v829 = vunpack.c.l.bf16 %v797
        %v830 = vunpack.c.l.bf16 %v798
        %v831 = vunpack.c.h.bf16 %v797
        %v832 = vunpack.c.h.bf16 %v798
        %v833 = vunpack.c.l.bf16 %v799
        %v834 = vunpack.c.l.bf16 %v800
        %v835 = vunpack.c.h.bf16 %v799
        %v836 = vunpack.c.h.bf16 %v800
        %v837 = vunpack.c.l.bf16 %v801
        %v838 = vunpack.c.l.bf16 %v802
        %v839 = vunpack.c.h.bf16 %v801
        %v840 = vunpack.c.h.bf16 %v802
        %v841 = vunpack.c.l.bf16 %v803
        %v842 = vunpack.c.l.bf16 %v804
        %v843 = vunpack.c.h.bf16 %v803
        %v844 = vunpack.c.h.bf16 %v804
        %v845 = vunpack.c.l.bf16 %v805
        %v846 = vunpack.c.l.bf16 %v806
        %v847 = vunpack.c.h.bf16 %v805
        %v848 = vunpack.c.h.bf16 %v806
        %v849 = vunpack.c.l.bf16 %v807
        %v850 = vunpack.c.l.bf16 %v808
        %v851 = vunpack.c.h.bf16 %v807
        %v852 = vunpack.c.h.bf16 %v808
        %v853 = vunpack.c.l.bf16 %v809
        %v854 = vunpack.c.l.bf16 %v810
        %v855 = vunpack.c.h.bf16 %v809
        %v856 = vunpack.c.h.bf16 %v810
        %v857 = vunpack.c.l.bf16 %v811
        %v858 = vunpack.c.l.bf16 %v812
        %v859 = vunpack.c.h.bf16 %v811
        %v860 = vunpack.c.h.bf16 %v812
        %v861 = vunpack.c.l.bf16 %v813
        %v862 = vunpack.c.l.bf16 %v814
        %v863 = vunpack.c.h.bf16 %v813
        %v864 = vunpack.c.h.bf16 %v814
        %v865 = vunpack.c.l.bf16 %v815
        %v866 = vunpack.c.l.bf16 %v816
        %v867 = vunpack.c.h.bf16 %v815
        %v868 = vunpack.c.h.bf16 %v816
        %v869 = vunpack.c.l.bf16 %v817
        %v870 = vunpack.c.l.bf16 %v818
        %v871 = vunpack.c.h.bf16 %v817
        %v872 = vunpack.c.h.bf16 %v818
        %v873 = vunpack.c.l.bf16 %v819
        %v874 = vunpack.c.l.bf16 %v820
        %v875 = vunpack.c.h.bf16 %v819
        %v876 = vunpack.c.h.bf16 %v820
        %v877 = vunpack.c.l.bf16 %v821
        %v878 = vunpack.c.l.bf16 %v822
        %v879 = vunpack.c.h.bf16 %v821
        %v880 = vunpack.c.h.bf16 %v822
        %v881 = vunpack.c.l.bf16 %v823
        %v882 = vunpack.c.l.bf16 %v824
        %v883 = vunpack.c.h.bf16 %v823
        %v884 = vunpack.c.h.bf16 %v824
        %v885 = vunpack.c.l.bf16 %v825
        %v886 = vunpack.c.l.bf16 %v826
        %v887 = vunpack.c.h.bf16 %v825
        %v888 = vunpack.c.h.bf16 %v826
        %v889 = vunpack.c.l.bf16 %v827
        %v890 = vunpack.c.l.bf16 %v828
        %v891 = vunpack.c.h.bf16 %v827
        %v892 = vunpack.c.h.bf16 %v828
        %v893 = vmul.f32 %v829, 1.442695
        %v894 = vpow.pop %v893
        %v895 = vmul.f32 %v830, 1.442695
        %v896 = vpow.pop %v895
        %v897 = vmul.f32 %v831, 1.442695
        %v898 = vpow.pop %v897
        %v899 = vmul.f32 %v832, 1.442695
        %v900 = vpow.pop %v899
        %v901 = vmul.f32 %v833, 1.442695
        %v902 = vpow.pop %v901
        %v903 = vmul.f32 %v834, 1.442695
        %v904 = vpow.pop %v903
        %v905 = vmul.f32 %v835, 1.442695
        %v906 = vpow.pop %v905
        %v907 = vmul.f32 %v836, 1.442695
        %v908 = vpow.pop %v907
        %v909 = vmul.f32 %v837, 1.442695
        %v910 = vpow.pop %v909
        %v911 = vmul.f32 %v838, 1.442695
        %v912 = vpow.pop %v911
        %v913 = vmul.f32 %v839, 1.442695
        %v914 = vpow.pop %v913
        %v915 = vmul.f32 %v840, 1.442695
        %v916 = vpow.pop %v915
        %v917 = vmul.f32 %v841, 1.442695
        %v918 = vpow.pop %v917
        %v919 = vmul.f32 %v842, 1.442695
        %v920 = vpow.pop %v919
        %v921 = vmul.f32 %v843, 1.442695
        %v922 = vpow.pop %v921
        %v923 = vmul.f32 %v844, 1.442695
        %v924 = vpow.pop %v923
        %v925 = vmul.f32 %v845, 1.442695
        %v926 = vpow.pop %v925
        %v927 = vmul.f32 %v846, 1.442695
        %v928 = vpow.pop %v927
        %v929 = vmul.f32 %v847, 1.442695
        %v930 = vpow.pop %v929
        %v931 = vmul.f32 %v848, 1.442695
        %v932 = vpow.pop %v931
        %v933 = vmul.f32 %v849, 1.442695
        %v934 = vpow.pop %v933
        %v935 = vmul.f32 %v850, 1.442695
        %v936 = vpow.pop %v935
        %v937 = vmul.f32 %v851, 1.442695
        %v938 = vpow.pop %v937
        %v939 = vmul.f32 %v852, 1.442695
        %v940 = vpow.pop %v939
        %v941 = vmul.f32 %v853, 1.442695
        %v942 = vpow.pop %v941
        %v943 = vmul.f32 %v854, 1.442695
        %v944 = vpow.pop %v943
        %v945 = vmul.f32 %v855, 1.442695
        %v946 = vpow.pop %v945
        %v947 = vmul.f32 %v856, 1.442695
        %v948 = vpow.pop %v947
        %v949 = vmul.f32 %v857, 1.442695
        %v950 = vpow.pop %v949
        %v951 = vmul.f32 %v858, 1.442695
        %v952 = vpow.pop %v951
        %v953 = vmul.f32 %v859, 1.442695
        %v954 = vpow.pop %v953
        %v955 = vmul.f32 %v860, 1.442695
        %v956 = vpow.pop %v955
        %v957 = vmul.f32 %v861, 1.442695
        %v958 = vpow.pop %v957
        %v959 = vmul.f32 %v862, 1.442695
        %v960 = vpow.pop %v959
        %v961 = vmul.f32 %v863, 1.442695
        %v962 = vpow.pop %v961
        %v963 = vmul.f32 %v864, 1.442695
        %v964 = vpow.pop %v963
        %v965 = vmul.f32 %v865, 1.442695
        %v966 = vpow.pop %v965
        %v967 = vmul.f32 %v866, 1.442695
        %v968 = vpow.pop %v967
        %v969 = vmul.f32 %v867, 1.442695
        %v970 = vpow.pop %v969
        %v971 = vmul.f32 %v868, 1.442695
        %v972 = vpow.pop %v971
        %v973 = vmul.f32 %v869, 1.442695
        %v974 = vpow.pop %v973
        %v975 = vmul.f32 %v870, 1.442695
        %v976 = vpow.pop %v975
        %v977 = vmul.f32 %v871, 1.442695
        %v978 = vpow.pop %v977
        %v979 = vmul.f32 %v872, 1.442695
        %v980 = vpow.pop %v979
        %v981 = vmul.f32 %v873, 1.442695
        %v982 = vpow.pop %v981
        %v983 = vmul.f32 %v874, 1.442695
        %v984 = vpow.pop %v983
        %v985 = vmul.f32 %v875, 1.442695
        %v986 = vpow.pop %v985
        %v987 = vmul.f32 %v876, 1.442695
        %v988 = vpow.pop %v987
        %v989 = vmul.f32 %v877, 1.442695
        %v990 = vpow.pop %v989
        %v991 = vmul.f32 %v878, 1.442695
        %v992 = vpow.pop %v991
        %v993 = vmul.f32 %v879, 1.442695
        %v994 = vpow.pop %v993
        %v995 = vmul.f32 %v880, 1.442695
        %v996 = vpow.pop %v995
        %v997 = vmul.f32 %v881, 1.442695
        %v998 = vpow.pop %v997
        %v999 = vmul.f32 %v882, 1.442695
        %v1000 = vpow.pop %v999
        %v1001 = vmul.f32 %v883, 1.442695
        %v1002 = vpow.pop %v1001
        %v1003 = vmul.f32 %v884, 1.442695
        %v1004 = vpow.pop %v1003
        %v1005 = vmul.f32 %v885, 1.442695
        %v1006 = vpow.pop %v1005
        %v1007 = vmul.f32 %v886, 1.442695
        %v1008 = vpow.pop %v1007
        %v1009 = vmul.f32 %v887, 1.442695
        %v1010 = vpow.pop %v1009
        %v1011 = vmul.f32 %v888, 1.442695
        %v1012 = vpow.pop %v1011
        %v1013 = vmul.f32 %v889, 1.442695
        %v1014 = vpow.pop %v1013
        %v1015 = vmul.f32 %v890, 1.442695
        %v1016 = vpow.pop %v1015
        %v1017 = vmul.f32 %v891, 1.442695
        %v1018 = vpow.pop %v1017
        %v1019 = vmul.f32 %v892, 1.442695
        %v1020 = vpow.pop %v1019
        %v1021 = vpack.c.bf16 %v898, %v894
        %v1022 = vpack.c.bf16 %v900, %v896
        %v1023 = vpack.c.bf16 %v906, %v902
        %v1024 = vpack.c.bf16 %v908, %v904
        %v1025 = vpack.c.bf16 %v914, %v910
        %v1026 = vpack.c.bf16 %v916, %v912
        %v1027 = vpack.c.bf16 %v922, %v918
        %v1028 = vpack.c.bf16 %v924, %v920
        %v1029 = vpack.c.bf16 %v930, %v926
        %v1030 = vpack.c.bf16 %v932, %v928
        %v1031 = vpack.c.bf16 %v938, %v934
        %v1032 = vpack.c.bf16 %v940, %v936
        %v1033 = vpack.c.bf16 %v946, %v942
        %v1034 = vpack.c.bf16 %v948, %v944
        %v1035 = vpack.c.bf16 %v954, %v950
        %v1036 = vpack.c.bf16 %v956, %v952
        %v1037 = vpack.c.bf16 %v962, %v958
        %v1038 = vpack.c.bf16 %v964, %v960
        %v1039 = vpack.c.bf16 %v970, %v966
        %v1040 = vpack.c.bf16 %v972, %v968
        %v1041 = vpack.c.bf16 %v978, %v974
        %v1042 = vpack.c.bf16 %v980, %v976
        %v1043 = vpack.c.bf16 %v986, %v982
        %v1044 = vpack.c.bf16 %v988, %v984
        %v1045 = vpack.c.bf16 %v994, %v990
        %v1046 = vpack.c.bf16 %v996, %v992
        %v1047 = vpack.c.bf16 %v1002, %v998
        %v1048 = vpack.c.bf16 %v1004, %v1000
        %v1049 = vpack.c.bf16 %v1010, %v1006
        %v1050 = vpack.c.bf16 %v1012, %v1008
        %v1051 = vpack.c.bf16 %v1018, %v1014
        %v1052 = vpack.c.bf16 %v1020, %v1016
        %v1055 = vunpack.c.l.b16 %v364
        %v1056 = vunpack.c.h.b16 %v364
        %v1057 = vunpack.c.l.b16 %v365
        %v1058 = vunpack.c.h.b16 %v365
        %v1059 = vpack.c.b16 %v1057, %v1055
        %v1060 = vpack.c.b16 %v1058, %v1056
        %1063 = vmatpush.bf16.xpose.msra.mxu0 %v1035
        %1064 = vmatpush.bf16.xpose.msra.mxu0 %v1033
        %1065 = vmatpush.bf16.xpose.msra.mxu0 %v1031
        %1066 = vmatpush.bf16.xpose.msra.mxu0 %v1029
        %1067 = vmatpush.bf16.xpose.msra.mxu0 %v1027
        %1068 = vmatpush.bf16.xpose.msra.mxu0 %v1025
        %1069 = vmatpush.bf16.xpose.msra.mxu0 %v1023
        %1070 = vmatpush.bf16.xpose.msra.mxu0 %v1021
        %1071 = vmatmul.bf16.gmra.mxu0 %v1059
        %v1072 = vpop.f32.mrf.mxu0
        %v1073 = vadd.f32 0.0, %v1072
        %v1074 = vpop.f32.mrf.mxu0
        %1075 = vdwg.mxu0
        %1076 = vmatpush.bf16.xpose.msra.mxu0 %v1036
        %1077 = vmatpush.bf16.xpose.msra.mxu0 %v1034
        %1078 = vmatpush.bf16.xpose.msra.mxu0 %v1032
        %1079 = vmatpush.bf16.xpose.msra.mxu0 %v1030
        %1080 = vmatpush.bf16.xpose.msra.mxu0 %v1028
        %1081 = vmatpush.bf16.xpose.msra.mxu0 %v1026
        %1082 = vmatpush.bf16.xpose.msra.mxu0 %v1024
        %1083 = vmatpush.bf16.xpose.msra.mxu0 %v1022
        %1084 = vmatmul.bf16.gmra.mxu0 %v1060
        %v1085 = vpop.f32.mrf.mxu0
        %v1086 = vadd.f32 %v1073, %v1085
        %v1087 = vpop.f32.mrf.mxu0
        %1088 = vdwg.mxu0
        %1089 = vmatpush.bf16.xpose.msra.mxu0 %v1051
        %1090 = vmatpush.bf16.xpose.msra.mxu0 %v1049
        %1091 = vmatpush.bf16.xpose.msra.mxu0 %v1047
        %1092 = vmatpush.bf16.xpose.msra.mxu0 %v1045
        %1093 = vmatpush.bf16.xpose.msra.mxu0 %v1043
        %1094 = vmatpush.bf16.xpose.msra.mxu0 %v1041
        %1095 = vmatpush.bf16.xpose.msra.mxu0 %v1039
        %1096 = vmatpush.bf16.xpose.msra.mxu0 %v1037
        %1097 = vmatmul.bf16.gmra.mxu0 %v1059
        %v1098 = vpop.f32.mrf.mxu0
        %v1099 = vadd.f32 0.0, %v1098
        %v1100 = vpop.f32.mrf.mxu0
        %1101 = vdwg.mxu0
        %1102 = vmatpush.bf16.xpose.msra.mxu0 %v1052
        %1103 = vmatpush.bf16.xpose.msra.mxu0 %v1050
        %1104 = vmatpush.bf16.xpose.msra.mxu0 %v1048
        %1105 = vmatpush.bf16.xpose.msra.mxu0 %v1046
        %1106 = vmatpush.bf16.xpose.msra.mxu0 %v1044
        %1107 = vmatpush.bf16.xpose.msra.mxu0 %v1042
        %1108 = vmatpush.bf16.xpose.msra.mxu0 %v1040
        %1109 = vmatpush.bf16.xpose.msra.mxu0 %v1038
        %1110 = vmatmul.bf16.gmra.mxu0 %v1060
        %v1111 = vpop.f32.mrf.mxu0
        %v1112 = vadd.f32 %v1099, %v1111
        %v1113 = vpop.f32.mrf.mxu0
        %1114 = vdwg.mxu0
        %s1115 = sld [smem:[#allocation3]]
        %v1116 = vrcp.pop %v1086
        %v1117 = vrcp.pop %v1112
        %v1118 = vstv %s1115
        %v1119 = vmul.f32 %v1118, %v1116
        %v1120 = vmul.f32 %v1118, %v1117
        %v1121 = vld [vmem:[%s210] sm:$0xff]
        %v1122 = vperm.slane %v1119, 4
        %v1123 = vperm.slane %v1120, 4
        %v1124 = vmul.f32 %v1086, %v1122
        %v1125 = vmul.f32 %v1112, %v1123
        %1127 = vst [vmem:[#allocation1] ss:$2 sm:$0xff] %v1121
        %v1128 = vld.sshfl [vmem:[#allocation1] sm:$0xff pattern:$0x75316420]
        %v1129 = vld.sshfl [vmem:[#allocation1 + $0x8] sm:$0xff pattern:$0x75316420]
        %v1132 = vadd.f32 %v1124, %v1128
        %v1133 = vadd.f32 %v1125, %v1129
        %v1136 = vrot.slane %v1133, 4
        %vm1137 = vcmask 1043456
        %v1138 = vsel %vm1137, %v1132, %v1136
        %1140 = vst [vmem:[%s205] sm:$0xff] %v1138
        %s1141 = sand.u32 %s130, 1
        %s1142 = scalar_lea.sflag [#allocation5], %s1141
        %s1143 = sand.u32 %s130, 1
        %s1144 = smul.addr %s1143, 8
        %s1145 = scalar_lea.vmem [#allocation4], %s1144
        // Predicated region
        $region41: #{tpu_custom_call.1} parent=35 // pred_check
          %p1146 = pneg %p140
        $region42: #{tpu_custom_call.1} parent=35 // pred_check_branch
          %1148 = sbr.rel (%p1146) target = $region44
        $region43: #{tpu_custom_call.1} parent=35 // pred_region
          %s1149 = smul.u32 2, %s24
          %1151 = vsyncadd %s1142, 0
          %s1152 = smul.addr %s23, 2
          %s1153 = sadd.s32 %s1149, %s1152
          %s1154 = smul.addr %s1153, 4
          %s1155 = scalar_lea.hbm %s4, %s1154
          %s1157 = sshll.u32 %s1145, 4
          %s1158 = int_to_ptr.vmem [resolvable:$true] %s1157
          %s1159 = sshll.u32 %s1155, 4
          %s1160 = int_to_ptr.hbm [resolvable:$true] %s1159
          %1162 = dma.vmem_to_hbm [thread:$0]  %s1158, 128, %s1160, %s1142
        $region44: #{tpu_custom_call.1} parent=35 // pred_fallthru
          _
      $region36: #{tpu_custom_call.1} parent=5 // pred_fallthru
        _
      %p1163 = scmp.le.s32.totalorder 2, %s14
      // Predicated region
      $region45: #{tpu_custom_call.1} parent=5 // pred_check
        %p1164 = pneg %p1163
      $region46: #{tpu_custom_call.1} parent=5 // pred_check_branch
        %1166 = sbr.rel (%p1164) target = $region48
      $region47: #{tpu_custom_call.1} parent=5 // pred_region
        %s1167 = ssub.s32 %s14, 2
        // Predicated region
        $region49: #{tpu_custom_call.1} parent=47 // pred_check
          %p1168 = pneg %p146
        $region50: #{tpu_custom_call.1} parent=47 // pred_check_branch
          %1170 = sbr.rel (%p1168) target = $region52
        $region51: #{tpu_custom_call.1} parent=47 // pred_region
          %s1171 = sand.u32 %s131, 1
          %s1172 = scalar_lea.sflag [#allocation5], %s1171
          %s1173 = sand.u32 %s131, 1
          %s1174 = smul.addr %s1173, 8
          %s1175 = scalar_lea.vmem [#allocation4], %s1174
          %1177 = dma.done %s1172, 128
        $region52: #{tpu_custom_call.1} parent=47 // pred_fallthru
          _
      $region48: #{tpu_custom_call.1} parent=5 // pred_fallthru
        _
    $region6: #{tpu_custom_call.1} parent=1 // loop_footer
      %s18 = sadd.s32 1, %s14
    $region7: #{tpu_custom_call.1} parent=1 // loop_footer_branch
      %13 = sbr.rel target = $region3
    $region8: #{tpu_custom_call.1} parent=1 // loop_exit
      _
    %1178 = vsyncpa [#allocation5], 1
    %s1179 = scalar_lea.sflag [#allocation5], 1
    %1180 = vsyncpa %s1179, 1

</llo_original>
